<compile_context>
chip_gen: v7x
topology: tpu7x:2x2x1
jax: 0.10.0
libtpu: 0.0.40
codegen_flags: <defaults>
</compile_context>

<pallas_src>
import jax
import jax.numpy as jnp
from jax.experimental import pallas as pl
from jax.experimental.pallas import tpu as pltpu


def _round_up(x, m):
    return -(-x // m) * m


def _split_hi_lo(x_f32):
    """Split an f32 array into bf16 (hi, lo) with x ~= hi + lo (residual ~2^-18)."""
    hi = x_f32.astype(jnp.bfloat16)
    lo = (x_f32 - hi.astype(jnp.float32)).astype(jnp.bfloat16)
    return hi, lo


def _make_kernel(T, D, *, precise, z_is_bf16):
    TD = T * D
    f32 = jnp.float32

    def sel_dot(x, sel_ref):
        # x @ sel with f32 accumulation; sel is a bf16-exact 0/1 selector matrix.
        # precise=True recovers f32-level accuracy with a 2-pass hi/lo split.
        sel = sel_ref[...]
        if not precise:
            return jnp.dot(x.astype(jnp.bfloat16), sel, preferred_element_type=f32)
        hi, lo = _split_hi_lo(x)
        return (jnp.dot(hi, sel, preferred_element_type=f32)
                + jnp.dot(lo, sel, preferred_element_type=f32))

    def kernel(z_ref, mrh_ref, mrl_ref, s_ref, e_ref, g_ref, o_ref):
        # z_ref   : (BB, T*D) lane-dense batch slab (input dtype)
        # mrh/mrl : (D, T*D)  hi/lo bf16 parts of tile(WtW, T)      (resident)
        # s_ref   : (T*D, T)  0/1 "sum over D within each t"        (resident)
        # e_ref   : (T, T*D)  0/1 "broadcast each t across its D"   (resident)
        # g_ref   : (T*D, D)  0/1 "sum over t for each feature d"   (resident)
        # o_ref   : (BB, D)

        # ---- v_tiled[b, t*D+d] = sum_k z[b,(T-1)*D+k] * M[k,d]   (MXU) ----
        z_last = z_ref[:, pl.ds(TD - D, D)]
        zl_hi = z_last.astype(jnp.bfloat16)                  # exact when z is bf16
        v = jnp.dot(zl_hi, mrh_ref[...], preferred_element_type=f32)
        if precise:
            v = v + jnp.dot(zl_hi, mrl_ref[...], preferred_element_type=f32)
            if not z_is_bf16:
                zl_lo = (z_last.astype(f32) - zl_hi.astype(f32)).astype(jnp.bfloat16)
                v = v + jnp.dot(zl_lo, mrh_ref[...], preferred_element_type=f32)

        # ---- scores[b, t] = sum_d z[b, t*D+d] * v_tiled[b, t*D+d] ----
        p = z_ref[...].astype(f32) * v                       # lane-dense VPU multiply
        scores = sel_dot(p, s_ref)                           # (BB, T) MXU segment-sum

        # ---- dense softmax over the (lane) time axis ----
        m = jnp.max(scores, axis=-1, keepdims=True)
        e = jnp.exp(scores - m)
        denom = jnp.sum(e, axis=-1, keepdims=True)
        # approx=True would be marginally cheaper but its approximation error is on the
        # order of the accuracy target, so keep the exact reciprocal.
        lam = e * pl.reciprocal(denom, approx=False)         # (BB, T)

        # ---- out[b, d] = sum_t lam[b, t] * z[b, t*D+d] ----
        lam_exp = sel_dot(lam, e_ref)                        # (BB, T*D) broadcast via MXU
        q = lam_exp * z_ref[...].astype(f32)                 # lane-dense VPU multiply
        out = sel_dot(q, g_ref)                              # (BB, D) MXU segment-sum
        o_ref[...] = out.astype(o_ref.dtype)

    return kernel


def temporal_attention(z, weight, *, block_b=2048, precise=True):
    """z: (B, T, D); weight: (D, D) as in nn.Linear (out_features, in_features)."""
    B, T, D = z.shape
    TD = T * D
    f32 = jnp.float32

    # --- tiny resident constants (computed once; constant index_map keeps them in VMEM) ---
    # M = WtW so that h_t . h_last == z_t . M . z_last (exact rewrite); full f32 precision.
    M = jnp.dot(weight.T.astype(f32), weight.astype(f32),
                precision=jax.lax.Precision.HIGHEST)
    MR = jnp.tile(M, (1, T))                                          # (D, TD)
    MR_hi = MR.astype(jnp.bfloat16)
    MR_lo = (MR - MR_hi.astype(f32)).astype(jnp.bfloat16)
    t_of = jnp.arange(TD, dtype=jnp.int32) // D
    d_of = jnp.arange(TD, dtype=jnp.int32) % D
    S = (t_of[:, None] == jnp.arange(T, dtype=jnp.int32)[None, :]).astype(jnp.bfloat16)
    E = S.T                                                           # (T, TD)
    G = (d_of[:, None] == jnp.arange(D, dtype=jnp.int32)[None, :]).astype(jnp.bfloat16)

    # --- batch blocking: lane-dense (BB, T*D) slabs ---
    z_flat = z.reshape(B, TD)                                         # free (row-major)
    B8 = _round_up(B, 8)
    # BB is a multiple of 8 ((8,128) rule on the (BB, D) output block); prefer >= 2 grid
    # steps (v7x megacore sharding + DMA/compute pipelining) without exceeding block_b.
    # block_b=2048 keeps double-buffered f32 slabs well inside even v5e's 16 MiB VMEM.
    BB = min(_round_up(block_b, 8), max(8, _round_up(pl.cdiv(B8, 2), 8)))
    n_blocks = pl.cdiv(B, BB)
    B_pad = n_blocks * BB
    if B_pad != B:
        # Zero rows -> zero scores -> uniform softmax -> zero output; sliced off below.
        z_flat = jnp.pad(z_flat, ((0, B_pad - B), (0, 0)))

    itemsize = jnp.dtype(z.dtype).itemsize
    cost = pl.CostEstimate(
        flops=4 * B_pad * TD * (D + T),
        transcendentals=B_pad * T,
        bytes_accessed=B_pad * (TD + D) * itemsize + 2 * (2 * D * TD + 2 * T * TD + TD * D),
    )

    kernel = _make_kernel(T, D, precise=precise, z_is_bf16=(z.dtype == jnp.bfloat16))

    out = pl.pallas_call(
        kernel,
        out_shape=jax.ShapeDtypeStruct((B_pad, D), z.dtype),
        grid=(n_blocks,),
        in_specs=[
            pl.BlockSpec((BB, TD), lambda b: (b, 0)),
            pl.BlockSpec((D, TD), lambda b: (0, 0)),      # resident across the grid
            pl.BlockSpec((D, TD), lambda b: (0, 0)),
            pl.BlockSpec((TD, T), lambda b: (0, 0)),
            pl.BlockSpec((T, TD), lambda b: (0, 0)),
            pl.BlockSpec((TD, D), lambda b: (0, 0)),
        ],
        out_specs=pl.BlockSpec((BB, D), lambda b: (b, 0)),
        compiler_params=pltpu.CompilerParams(
            dimension_semantics=("parallel",),             # megacore sharding on v7x
        ),
        cost_estimate=cost,
    )(z_flat, MR_hi, MR_lo, S, E, G)
    return out[:B]


def temporal_attention_ref(z, weight):
    """Pure-JAX reference mirroring the PyTorch forward (near-exact f32)."""
    hp = jax.lax.Precision.HIGHEST
    zf = z.astype(jnp.float32)
    h = jnp.einsum("btd,ed->bte", zf, weight.astype(jnp.float32), precision=hp)
    scores = jnp.einsum("bte,be->bt", h, h[:, -1, :], precision=hp)
    lam = jax.nn.softmax(scores, axis=1)
    return jnp.einsum("bt,btd->bd", lam, zf, precision=hp)


if __name__ == "__main__":
    B, T, D = 2, 8, 32  # d_model = 32, seq len = 8

    key = jax.random.PRNGKey(0)
    kz, kw, kz2 = jax.random.split(key, 3)
    z = jax.random.normal(kz, (B, T, D), dtype=jnp.float32)
    # Deterministic init mimicking nn.Linear default (uniform(-1/sqrt(D), 1/sqrt(D)))
    bound = 1.0 / (D ** 0.5)
    weight = jax.random.uniform(kw, (D, D), minval=-bound, maxval=bound, dtype=jnp.float32)

    # 1) Single-block grid (B=2 padded to 8 rows).
    out = jax.block_until_ready(temporal_attention(z, weight))
    ref = temporal_attention_ref(z, weight)
    assert out.shape == (B, D)
    assert jnp.allclose(out, ref, atol=1e-4, rtol=1e-4), (
        f"max abs err = {jnp.max(jnp.abs(out - ref))}")

    # 2) Multi-block grid with batch padding (B=20, block_b=8 -> 3 blocks, pad to 24).
    B2 = 20
    z2 = jax.random.normal(kz2, (B2, T, D), dtype=jnp.float32)
    out2 = jax.block_until_ready(temporal_attention(z2, weight, block_b=8))
    ref2 = temporal_attention_ref(z2, weight)
    assert out2.shape == (B2, D)
    assert jnp.allclose(out2, ref2, atol=1e-4, rtol=1e-4), (
        f"max abs err = {jnp.max(jnp.abs(out2 - ref2))}")

    # 3) bf16 end-to-end (halves HBM bytes of this bandwidth-bound kernel).
    z3 = z2.astype(jnp.bfloat16)
    out3 = jax.block_until_ready(temporal_attention(z3, weight))
    ref3 = temporal_attention_ref(z3, weight)
    assert out3.dtype == jnp.bfloat16 and out3.shape == (B2, D)
    assert jnp.allclose(out3.astype(jnp.float32), ref3, atol=2e-2, rtol=2e-2), (
        f"max abs err = {jnp.max(jnp.abs(out3.astype(jnp.float32) - ref3))}")

    # 4) Fast path: single-pass MXU reductions (bf16-level accuracy).
    out4 = jax.block_until_ready(temporal_attention(z2, weight, precise=False))
    rel = jnp.linalg.norm(out4 - ref2) / jnp.linalg.norm(ref2)
    assert out4.shape == (B2, D)
    assert rel < 5e-2, f"precise=False relative L2 error = {rel}"

    print("KERNEL_OK")
</pallas_src>

<mosaic_0001>
module attributes {stable_mosaic.version = 11 : i64} {
  func.func @kernel(%arg0: i32, %arg1: memref<8x256xf32, #tpu.memory_space<vmem>>, %arg2: memref<32x256xbf16, #tpu.memory_space<vmem>>, %arg3: memref<32x256xbf16, #tpu.memory_space<vmem>>, %arg4: memref<256x8xbf16, #tpu.memory_space<vmem>>, %arg5: memref<8x256xbf16, #tpu.memory_space<vmem>>, %arg6: memref<256x32xbf16, #tpu.memory_space<vmem>>, %arg7: memref<8x32xf32, #tpu.memory_space<vmem>>) attributes {dimension_semantics = [#tpu.dimension_semantics<parallel>], iteration_bounds = array<i64: 1>, scalar_prefetch = 0 : i64, scratch_operands = 0 : i64, tpu.core_type = #tpu.core_type<tc>, window_params = [{transform_indices = @transform_0, window_bounds = array<i64: 8, 256>}, {pipeline_mode = #tpu.pipeline_mode<synchronous>, transform_indices = @transform_1, window_bounds = array<i64: 32, 256>}, {pipeline_mode = #tpu.pipeline_mode<synchronous>, transform_indices = @transform_2, window_bounds = array<i64: 32, 256>}, {pipeline_mode = #tpu.pipeline_mode<synchronous>, transform_indices = @transform_3, window_bounds = array<i64: 256, 8>}, {pipeline_mode = #tpu.pipeline_mode<synchronous>, transform_indices = @transform_4, window_bounds = array<i64: 8, 256>}, {pipeline_mode = #tpu.pipeline_mode<synchronous>, transform_indices = @transform_5, window_bounds = array<i64: 256, 32>}, {transform_indices = @transform_6, window_bounds = array<i64: 8, 32>}]} {
    %c0 = arith.constant 0 : index
    %c224 = arith.constant 224 : index
    %0 = vector.load %arg1[%c0, %c224] : memref<8x256xf32, #tpu.memory_space<vmem>>, vector<8x32xf32>
    %1 = arith.truncf %0 : vector<8x32xf32> to vector<8x32xbf16>
    %c0_0 = arith.constant 0 : index
    %c0_1 = arith.constant 0 : index
    %2 = vector.load %arg2[%c0_0, %c0_1] : memref<32x256xbf16, #tpu.memory_space<vmem>>, vector<32x256xbf16>
    %cst = arith.constant dense<0.000000e+00> : vector<8x256xf32>
    %3 = tpu.matmul %1, %2, %cst {dimension_numbers = #tpu.dot_dimension_numbers<[1], [0], [0], [1], [0, 0, 1, 1], [], []>} : vector<8x32xbf16>, vector<32x256xbf16>, vector<8x256xf32> -> vector<8x256xf32>
    %c0_2 = arith.constant 0 : index
    %c0_3 = arith.constant 0 : index
    %4 = vector.load %arg3[%c0_2, %c0_3] : memref<32x256xbf16, #tpu.memory_space<vmem>>, vector<32x256xbf16>
    %cst_4 = arith.constant dense<0.000000e+00> : vector<8x256xf32>
    %5 = tpu.matmul %1, %4, %cst_4 {dimension_numbers = #tpu.dot_dimension_numbers<[1], [0], [0], [1], [0, 0, 1, 1], [], []>} : vector<8x32xbf16>, vector<32x256xbf16>, vector<8x256xf32> -> vector<8x256xf32>
    %6 = arith.addf %3, %5 : vector<8x256xf32>
    %7 = arith.extf %1 : vector<8x32xbf16> to vector<8x32xf32>
    %8 = arith.subf %0, %7 : vector<8x32xf32>
    %9 = arith.truncf %8 : vector<8x32xf32> to vector<8x32xbf16>
    %c0_5 = arith.constant 0 : index
    %c0_6 = arith.constant 0 : index
    %10 = vector.load %arg2[%c0_5, %c0_6] : memref<32x256xbf16, #tpu.memory_space<vmem>>, vector<32x256xbf16>
    %cst_7 = arith.constant dense<0.000000e+00> : vector<8x256xf32>
    %11 = tpu.matmul %9, %10, %cst_7 {dimension_numbers = #tpu.dot_dimension_numbers<[1], [0], [0], [1], [0, 0, 1, 1], [], []>} : vector<8x32xbf16>, vector<32x256xbf16>, vector<8x256xf32> -> vector<8x256xf32>
    %12 = arith.addf %6, %11 : vector<8x256xf32>
    %c0_8 = arith.constant 0 : index
    %c0_9 = arith.constant 0 : index
    %13 = vector.load %arg1[%c0_8, %c0_9] : memref<8x256xf32, #tpu.memory_space<vmem>>, vector<8x256xf32>
    %14 = arith.mulf %13, %12 : vector<8x256xf32>
    %c0_10 = arith.constant 0 : index
    %c0_11 = arith.constant 0 : index
    %15 = vector.load %arg4[%c0_10, %c0_11] : memref<256x8xbf16, #tpu.memory_space<vmem>>, vector<256x8xbf16>
    %16 = arith.truncf %14 : vector<8x256xf32> to vector<8x256xbf16>
    %17 = arith.extf %16 : vector<8x256xbf16> to vector<8x256xf32>
    %18 = arith.subf %14, %17 : vector<8x256xf32>
    %19 = arith.truncf %18 : vector<8x256xf32> to vector<8x256xbf16>
    %cst_12 = arith.constant dense<0.000000e+00> : vector<8x8xf32>
    %20 = tpu.matmul %16, %15, %cst_12 {dimension_numbers = #tpu.dot_dimension_numbers<[1], [0], [0], [1], [0, 0, 1, 1], [], []>} : vector<8x256xbf16>, vector<256x8xbf16>, vector<8x8xf32> -> vector<8x8xf32>
    %cst_13 = arith.constant dense<0.000000e+00> : vector<8x8xf32>
    %21 = tpu.matmul %19, %15, %cst_13 {dimension_numbers = #tpu.dot_dimension_numbers<[1], [0], [0], [1], [0, 0, 1, 1], [], []>} : vector<8x256xbf16>, vector<256x8xbf16>, vector<8x8xf32> -> vector<8x8xf32>
    %22 = arith.addf %20, %21 : vector<8x8xf32>
    %cst_14 = arith.constant dense<0xFF800000> : vector<8xf32>
    %23 = vector.multi_reduction <maximumf>, %22, %cst_14 [1] : vector<8x8xf32> to vector<8xf32>
    %24 = vector.shape_cast %23 : vector<8xf32> to vector<8x1xf32>
    %25 = vector.broadcast %24 : vector<8x1xf32> to vector<8x8xf32>
    %26 = arith.subf %22, %25 : vector<8x8xf32>
    %27 = math.exp %26 : vector<8x8xf32>
    %cst_15 = arith.constant dense<0.000000e+00> : vector<8xf32>
    %28 = vector.multi_reduction <add>, %27, %cst_15 [1] : vector<8x8xf32> to vector<8xf32>
    %29 = vector.shape_cast %28 : vector<8xf32> to vector<8x1xf32>
    %30 = tpu.reciprocal %29 : vector<8x1xf32> -> vector<8x1xf32>
    %31 = vector.broadcast %30 : vector<8x1xf32> to vector<8x8xf32>
    %32 = arith.mulf %27, %31 : vector<8x8xf32>
    %c0_16 = arith.constant 0 : index
    %c0_17 = arith.constant 0 : index
    %33 = vector.load %arg5[%c0_16, %c0_17] : memref<8x256xbf16, #tpu.memory_space<vmem>>, vector<8x256xbf16>
    %34 = arith.truncf %32 : vector<8x8xf32> to vector<8x8xbf16>
    %35 = arith.extf %34 : vector<8x8xbf16> to vector<8x8xf32>
    %36 = arith.subf %32, %35 : vector<8x8xf32>
    %37 = arith.truncf %36 : vector<8x8xf32> to vector<8x8xbf16>
    %cst_18 = arith.constant dense<0.000000e+00> : vector<8x256xf32>
    %38 = tpu.matmul %34, %33, %cst_18 {dimension_numbers = #tpu.dot_dimension_numbers<[1], [0], [0], [1], [0, 0, 1, 1], [], []>} : vector<8x8xbf16>, vector<8x256xbf16>, vector<8x256xf32> -> vector<8x256xf32>
    %cst_19 = arith.constant dense<0.000000e+00> : vector<8x256xf32>
    %39 = tpu.matmul %37, %33, %cst_19 {dimension_numbers = #tpu.dot_dimension_numbers<[1], [0], [0], [1], [0, 0, 1, 1], [], []>} : vector<8x8xbf16>, vector<8x256xbf16>, vector<8x256xf32> -> vector<8x256xf32>
    %40 = arith.addf %38, %39 : vector<8x256xf32>
    %c0_20 = arith.constant 0 : index
    %c0_21 = arith.constant 0 : index
    %41 = vector.load %arg1[%c0_20, %c0_21] : memref<8x256xf32, #tpu.memory_space<vmem>>, vector<8x256xf32>
    %42 = arith.mulf %40, %41 : vector<8x256xf32>
    %c0_22 = arith.constant 0 : index
    %c0_23 = arith.constant 0 : index
    %43 = vector.load %arg6[%c0_22, %c0_23] : memref<256x32xbf16, #tpu.memory_space<vmem>>, vector<256x32xbf16>
    %44 = arith.truncf %42 : vector<8x256xf32> to vector<8x256xbf16>
    %45 = arith.extf %44 : vector<8x256xbf16> to vector<8x256xf32>
    %46 = arith.subf %42, %45 : vector<8x256xf32>
    %47 = arith.truncf %46 : vector<8x256xf32> to vector<8x256xbf16>
    %cst_24 = arith.constant dense<0.000000e+00> : vector<8x32xf32>
    %48 = tpu.matmul %44, %43, %cst_24 {dimension_numbers = #tpu.dot_dimension_numbers<[1], [0], [0], [1], [0, 0, 1, 1], [], []>} : vector<8x256xbf16>, vector<256x32xbf16>, vector<8x32xf32> -> vector<8x32xf32>
    %cst_25 = arith.constant dense<0.000000e+00> : vector<8x32xf32>
    %49 = tpu.matmul %47, %43, %cst_25 {dimension_numbers = #tpu.dot_dimension_numbers<[1], [0], [0], [1], [0, 0, 1, 1], [], []>} : vector<8x256xbf16>, vector<256x32xbf16>, vector<8x32xf32> -> vector<8x32xf32>
    %50 = arith.addf %48, %49 : vector<8x32xf32>
    %c0_26 = arith.constant 0 : index
    %c0_27 = arith.constant 0 : index
    %51 = vector.load %arg7[%c0_26, %c0_27] : memref<8x32xf32, #tpu.memory_space<vmem>>, vector<8x32xf32>
    tpu.vector_store %arg7[%c0_26, %c0_27], %50 {strides = array<i32>} : memref<8x32xf32, #tpu.memory_space<vmem>>, vector<8x32xf32>,
    return
  }
  func.func @transform_0(%arg0: i32) -> (i32, i32) {
    %c0_i32 = arith.constant 0 : i32
    %c0_i32_0 = arith.constant 0 : i32
    return %arg0, %c0_i32 : i32, i32
  }
  func.func @transform_1(%arg0: i32) -> (i32, i32) {
    %c0_i32 = arith.constant 0 : i32
    %c0_i32_0 = arith.constant 0 : i32
    %c0_i32_1 = arith.constant 0 : i32
    return %c0_i32, %c0_i32_0 : i32, i32
  }
  func.func @transform_2(%arg0: i32) -> (i32, i32) {
    %c0_i32 = arith.constant 0 : i32
    %c0_i32_0 = arith.constant 0 : i32
    %c0_i32_1 = arith.constant 0 : i32
    return %c0_i32, %c0_i32_0 : i32, i32
  }
  func.func @transform_3(%arg0: i32) -> (i32, i32) {
    %c0_i32 = arith.constant 0 : i32
    %c0_i32_0 = arith.constant 0 : i32
    %c0_i32_1 = arith.constant 0 : i32
    return %c0_i32, %c0_i32_0 : i32, i32
  }
  func.func @transform_4(%arg0: i32) -> (i32, i32) {
    %c0_i32 = arith.constant 0 : i32
    %c0_i32_0 = arith.constant 0 : i32
    %c0_i32_1 = arith.constant 0 : i32
    return %c0_i32, %c0_i32_0 : i32, i32
  }
  func.func @transform_5(%arg0: i32) -> (i32, i32) {
    %c0_i32 = arith.constant 0 : i32
    %c0_i32_0 = arith.constant 0 : i32
    %c0_i32_1 = arith.constant 0 : i32
    return %c0_i32, %c0_i32_0 : i32, i32
  }
  func.func @transform_6(%arg0: i32) -> (i32, i32) {
    %c0_i32 = arith.constant 0 : i32
    %c0_i32_0 = arith.constant 0 : i32
    return %arg0, %c0_i32 : i32, i32
  }
}

</mosaic_0001>

<llo_original>
// kernel: tpu_custom_call.1
$region0: #{tpu_custom_call.1}
  #allocation0 [shape = 'u32[]', space=smem, size = 0x4, offset = 0x4, fixed_abs, tag = 'smem constant byte address 0x4 - core index']
  #allocation1 [shape = 'u32[144,128]{1,0:T(1,128)}', space=vmem, size = 0x12000, scoped, tag = 'internal scratch']
  %s0 = inlined_call_operand.vmem [shape: f32[8,256], index: 0, kind: input, shape index: {}]
  %s1 = inlined_call_operand.vmem [shape: bf16[32,256], index: 1, kind: input, shape index: {}]
  %s2 = inlined_call_operand.vmem [shape: bf16[32,256], index: 2, kind: input, shape index: {}]
  %s3 = inlined_call_operand.vmem [shape: bf16[256,8], index: 3, kind: input, shape index: {}]
  %s4 = inlined_call_operand.vmem [shape: bf16[8,256], index: 4, kind: input, shape index: {}]
  %s5 = inlined_call_operand.vmem [shape: bf16[256,32], index: 5, kind: input, shape index: {}]
  %s6 = inlined_call_operand.hbm [shape: f32[8,32], index: 6, kind: output, shape index: {}]
  %s7 = sld [smem:[#allocation0]]
  $region34: #{tpu_custom_call.1} parent=0
    _
  %s9 = ssub.s32 1, %s7
  %s10 = scalar_select 0, %s9, %s7
  $region1: #{tpu_custom_call.1} parent=0
    #allocation2 [shape = 'u8[4096]{0}', space=vmem, size = 0x1000, scoped, tag = 'output window, operand 0, single buffered']
    #allocation3 [shape = 's32[1]{0}', space=sflag, size = 0x4, scoped, tag = 'scoped memory for tpu_custom_call.1']
    %11 = vsyncpa [#allocation3], 0
    // Predicated region
    $region2: #{tpu_custom_call.1} parent=1 // pred_check
      _
    $region3: #{tpu_custom_call.1} parent=1 // pred_check_branch
      %13 = sbr.rel (0) target = $region5
    $region4: #{tpu_custom_call.1} parent=1 // pred_region
      _
    $region5: #{tpu_custom_call.1} parent=1 // pred_fallthru
      _
    // Predicated region
    $region6: #{tpu_custom_call.1} parent=1 // pred_check
      _
    $region7: #{tpu_custom_call.1} parent=1 // pred_check_branch
      %15 = sbr.rel (0) target = $region9
    $region8: #{tpu_custom_call.1} parent=1 // pred_region
      _
    $region9: #{tpu_custom_call.1} parent=1 // pred_fallthru
      _
    // Predicated region
    $region10: #{tpu_custom_call.1} parent=1 // pred_check
      _
    $region11: #{tpu_custom_call.1} parent=1 // pred_check_branch
      %17 = sbr.rel (0) target = $region13
    $region12: #{tpu_custom_call.1} parent=1 // pred_region
      _
    $region13: #{tpu_custom_call.1} parent=1 // pred_fallthru
      _
    // Predicated region
    $region14: #{tpu_custom_call.1} parent=1 // pred_check
      _
    $region15: #{tpu_custom_call.1} parent=1 // pred_check_branch
      %19 = sbr.rel (0) target = $region17
    $region16: #{tpu_custom_call.1} parent=1 // pred_region
      _
    $region17: #{tpu_custom_call.1} parent=1 // pred_fallthru
      _
    // Predicated region
    $region18: #{tpu_custom_call.1} parent=1 // pred_check
      _
    $region19: #{tpu_custom_call.1} parent=1 // pred_check_branch
      %21 = sbr.rel (0) target = $region21
    $region20: #{tpu_custom_call.1} parent=1 // pred_region
      _
    $region21: #{tpu_custom_call.1} parent=1 // pred_fallthru
      _
    // Predicated region
    $region22: #{tpu_custom_call.1} parent=1 // pred_check
      _
    $region23: #{tpu_custom_call.1} parent=1 // pred_check_branch
      %23 = sbr.rel (0) target = $region25
    $region24: #{tpu_custom_call.1} parent=1 // pred_region
      _
    $region25: #{tpu_custom_call.1} parent=1 // pred_fallthru
      _
    %v25 = vld [vmem:[%s0 + $0x8] sm:$0xff]
    %v26 = vpack.c.bf16 %v25, %v25
    %v27 = vld [vmem:[%s1] sm:$0xff]
    %v28 = vld [vmem:[%s1 + $0x8] sm:$0xff]
    %v29 = vld [vmem:[%s1 + $0x10] sm:$0xff]
    %v30 = vld [vmem:[%s1 + $0x18] sm:$0xff]
    %v31 = vld [vmem:[%s2] sm:$0xff]
    %v32 = vld [vmem:[%s2 + $0x8] sm:$0xff]
    %v33 = vld [vmem:[%s2 + $0x10] sm:$0xff]
    %v34 = vld [vmem:[%s2 + $0x18] sm:$0xff]
    %36 = vrot.lane.b32.xlu0 %v26, 32
    %v37 = vpop.permute.xlu0 %36
    %v42 = vunpack.c.l.b16 %v31
    %v43 = vunpack.c.h.b16 %v31
    %v44 = vunpack.c.l.b16 %v32
    %v45 = vunpack.c.h.b16 %v32
    %v46 = vunpack.c.l.b16 %v33
    %v47 = vunpack.c.h.b16 %v33
    %v48 = vunpack.c.l.b16 %v34
    %v49 = vunpack.c.h.b16 %v34
    %v50 = vpack.c.b16 %v44, %v42
    %v51 = vpack.c.b16 %v45, %v43
    %v52 = vpack.c.b16 %v48, %v46
    %v53 = vpack.c.b16 %v49, %v47
    %vm58 = vcmask 261120
    %v60 = vsel %vm58, %v37, 0
    %62 = vmatprep.subr.bf16.mxu0 %v51
    %63 = vmatpush1.bf16.msra.mxu0 %v50
    %64 = vmatprep.subr.bf16.mxu0 %v53
    %65 = vmatpush1.bf16.msra.mxu0 %v52
    %66 = vmatprep.subr.bf16.mxu0 0
    %67 = vmatpush1.bf16.msra.mxu0 0
    %68 = vmatprep.subr.bf16.mxu0 0
    %69 = vmatpush1.bf16.msra.mxu0 0
    %70 = vmatprep.subr.bf16.mxu0 0
    %71 = vmatpush1.bf16.msra.mxu0 0
    %72 = vmatprep.subr.bf16.mxu0 0
    %73 = vmatpush1.bf16.msra.mxu0 0
    %74 = vmatprep.subr.bf16.mxu0 0
    %75 = vmatpush1.bf16.msra.mxu0 0
    %76 = vmatprep.subr.bf16.mxu0 0
    %77 = vmatpush1.bf16.msra.mxu0 0
    %78 = vmatprep.subr.bf16.mxu0 0
    %79 = vmatpush1.bf16.msra.mxu0 0
    %80 = vmatprep.subr.bf16.mxu0 0
    %81 = vmatpush1.bf16.msra.mxu0 0
    %82 = vmatprep.subr.bf16.mxu0 0
    %83 = vmatpush1.bf16.msra.mxu0 0
    %84 = vmatprep.subr.bf16.mxu0 0
    %85 = vmatpush1.bf16.msra.mxu0 0
    %86 = vmatprep.subr.bf16.mxu0 0
    %87 = vmatpush1.bf16.msra.mxu0 0
    %88 = vmatprep.subr.bf16.mxu0 0
    %89 = vmatpush1.bf16.msra.mxu0 0
    %90 = vmatprep.subr.bf16.mxu0 0
    %91 = vmatpush1.bf16.msra.mxu0 0
    %92 = vmatprep.subr.bf16.mxu0 0
    %93 = vmatpush1.bf16.msra.mxu0 0
    %94 = vmatprep.mubr.bf16.mxu0 0
    %95 = vmatmul.mubr.bf16.gmra.mrb[0].mxu0 %v60
    %v96 = vpop.f32.mrb[0].mxu0
    %v97 = vadd.f32 0.0, %v96
    %v98 = vpop.f32.mrb[0].mxu0
    %v99 = vadd.f32 0.0, %v98
    %v100 = vpop.f32.mrb[0].mxu0
    %v101 = vpop.f32.mrb[0].mxu0
    %102 = vdwg.mxu0
    %v107 = vunpack.c.l.b16 %v27
    %v108 = vunpack.c.h.b16 %v27
    %v109 = vunpack.c.l.b16 %v28
    %v110 = vunpack.c.h.b16 %v28
    %v111 = vunpack.c.l.b16 %v29
    %v112 = vunpack.c.h.b16 %v29
    %v113 = vunpack.c.l.b16 %v30
    %v114 = vunpack.c.h.b16 %v30
    %v115 = vpack.c.b16 %v109, %v107
    %v116 = vpack.c.b16 %v110, %v108
    %v117 = vpack.c.b16 %v113, %v111
    %v118 = vpack.c.b16 %v114, %v112
    %123 = vmatprep.subr.bf16.mxu0 %v116
    %124 = vmatpush1.bf16.msra.mxu0 %v115
    %125 = vmatprep.subr.bf16.mxu0 %v118
    %126 = vmatpush1.bf16.msra.mxu0 %v117
    %127 = vmatprep.subr.bf16.mxu0 0
    %128 = vmatpush1.bf16.msra.mxu0 0
    %129 = vmatprep.subr.bf16.mxu0 0
    %130 = vmatpush1.bf16.msra.mxu0 0
    %131 = vmatprep.subr.bf16.mxu0 0
    %132 = vmatpush1.bf16.msra.mxu0 0
    %133 = vmatprep.subr.bf16.mxu0 0
    %134 = vmatpush1.bf16.msra.mxu0 0
    %135 = vmatprep.subr.bf16.mxu0 0
    %136 = vmatpush1.bf16.msra.mxu0 0
    %137 = vmatprep.subr.bf16.mxu0 0
    %138 = vmatpush1.bf16.msra.mxu0 0
    %139 = vmatprep.subr.bf16.mxu0 0
    %140 = vmatpush1.bf16.msra.mxu0 0
    %141 = vmatprep.subr.bf16.mxu0 0
    %142 = vmatpush1.bf16.msra.mxu0 0
    %143 = vmatprep.subr.bf16.mxu0 0
    %144 = vmatpush1.bf16.msra.mxu0 0
    %145 = vmatprep.subr.bf16.mxu0 0
    %146 = vmatpush1.bf16.msra.mxu0 0
    %147 = vmatprep.subr.bf16.mxu0 0
    %148 = vmatpush1.bf16.msra.mxu0 0
    %149 = vmatprep.subr.bf16.mxu0 0
    %150 = vmatpush1.bf16.msra.mxu0 0
    %151 = vmatprep.subr.bf16.mxu0 0
    %152 = vmatpush1.bf16.msra.mxu0 0
    %153 = vmatprep.subr.bf16.mxu0 0
    %154 = vmatpush1.bf16.msra.mxu0 0
    %155 = vmatprep.mubr.bf16.mxu0 0
    %156 = vmatmul.mubr.bf16.gmra.mrb[0].mxu0 %v60
    %v157 = vpop.f32.mrb[0].mxu0
    %v158 = vadd.f32 %v97, %v157
    %v159 = vpop.f32.mrb[0].mxu0
    %v160 = vadd.f32 %v99, %v159
    %v161 = vpop.f32.mrb[0].mxu0
    %v162 = vpop.f32.mrb[0].mxu0
    %163 = vdwg.mxu0
    %v164 = vunpack.c.l.bf16 %v26
    %v165 = vsub.f32 %v25, %v164
    %v166 = vpack.c.bf16 %v165, %v165
    %168 = vrot.lane.b32.xlu0 %v166, 32
    %v169 = vpop.permute.xlu0 %168
    %v171 = vsel %vm58, %v169, 0
    %173 = vmatprep.subr.bf16.mxu0 %v116
    %174 = vmatpush1.bf16.msra.mxu0 %v115
    %175 = vmatprep.subr.bf16.mxu0 %v118
    %176 = vmatpush1.bf16.msra.mxu0 %v117
    %177 = vmatprep.subr.bf16.mxu0 0
    %178 = vmatpush1.bf16.msra.mxu0 0
    %179 = vmatprep.subr.bf16.mxu0 0
    %180 = vmatpush1.bf16.msra.mxu0 0
    %181 = vmatprep.subr.bf16.mxu0 0
    %182 = vmatpush1.bf16.msra.mxu0 0
    %183 = vmatprep.subr.bf16.mxu0 0
    %184 = vmatpush1.bf16.msra.mxu0 0
    %185 = vmatprep.subr.bf16.mxu0 0
    %186 = vmatpush1.bf16.msra.mxu0 0
    %187 = vmatprep.subr.bf16.mxu0 0
    %188 = vmatpush1.bf16.msra.mxu0 0
    %189 = vmatprep.subr.bf16.mxu0 0
    %190 = vmatpush1.bf16.msra.mxu0 0
    %191 = vmatprep.subr.bf16.mxu0 0
    %192 = vmatpush1.bf16.msra.mxu0 0
    %193 = vmatprep.subr.bf16.mxu0 0
    %194 = vmatpush1.bf16.msra.mxu0 0
    %195 = vmatprep.subr.bf16.mxu0 0
    %196 = vmatpush1.bf16.msra.mxu0 0
    %197 = vmatprep.subr.bf16.mxu0 0
    %198 = vmatpush1.bf16.msra.mxu0 0
    %199 = vmatprep.subr.bf16.mxu0 0
    %200 = vmatpush1.bf16.msra.mxu0 0
    %201 = vmatprep.subr.bf16.mxu0 0
    %202 = vmatpush1.bf16.msra.mxu0 0
    %203 = vmatprep.subr.bf16.mxu0 0
    %204 = vmatpush1.bf16.msra.mxu0 0
    %205 = vmatprep.mubr.bf16.mxu0 0
    %206 = vmatmul.mubr.bf16.gmra.mrb[0].mxu0 %v171
    %v207 = vpop.f32.mrb[0].mxu0
    %v208 = vadd.f32 0.0, %v207
    %v209 = vpop.f32.mrb[0].mxu0
    %v210 = vadd.f32 0.0, %v209
    %v211 = vpop.f32.mrb[0].mxu0
    %v212 = vpop.f32.mrb[0].mxu0
    %213 = vdwg.mxu0
    %v214 = vadd.f32 %v158, %v208
    %v215 = vadd.f32 %v160, %v210
    %v216 = vld [vmem:[%s0] sm:$0xff]
    %v217 = vmul.f32 %v216, %v214
    %v218 = vmul.f32 %v25, %v215
    %v219 = vld [vmem:[%s3] sm:$0xf]
    %v220 = vld [vmem:[%s3 + $0x4] sm:$0xf]
    %v221 = vld [vmem:[%s3 + $0x8] sm:$0xf]
    %v222 = vld [vmem:[%s3 + $0xc] sm:$0xf]
    %v223 = vld [vmem:[%s3 + $0x10] sm:$0xf]
    %v224 = vld [vmem:[%s3 + $0x14] sm:$0xf]
    %v225 = vld [vmem:[%s3 + $0x18] sm:$0xf]
    %v226 = vld [vmem:[%s3 + $0x1c] sm:$0xf]
    %v227 = vld [vmem:[%s3 + $0x20] sm:$0xf]
    %v228 = vld [vmem:[%s3 + $0x24] sm:$0xf]
    %v229 = vld [vmem:[%s3 + $0x28] sm:$0xf]
    %v230 = vld [vmem:[%s3 + $0x2c] sm:$0xf]
    %v231 = vld [vmem:[%s3 + $0x30] sm:$0xf]
    %v232 = vld [vmem:[%s3 + $0x34] sm:$0xf]
    %v233 = vld [vmem:[%s3 + $0x38] sm:$0xf]
    %v234 = vld [vmem:[%s3 + $0x3c] sm:$0xf]
    %v235 = vld [vmem:[%s3 + $0x40] sm:$0xf]
    %v236 = vld [vmem:[%s3 + $0x44] sm:$0xf]
    %v237 = vld [vmem:[%s3 + $0x48] sm:$0xf]
    %v238 = vld [vmem:[%s3 + $0x4c] sm:$0xf]
    %v239 = vld [vmem:[%s3 + $0x50] sm:$0xf]
    %v240 = vld [vmem:[%s3 + $0x54] sm:$0xf]
    %v241 = vld [vmem:[%s3 + $0x58] sm:$0xf]
    %v242 = vld [vmem:[%s3 + $0x5c] sm:$0xf]
    %v243 = vld [vmem:[%s3 + $0x60] sm:$0xf]
    %v244 = vld [vmem:[%s3 + $0x64] sm:$0xf]
    %v245 = vld [vmem:[%s3 + $0x68] sm:$0xf]
    %v246 = vld [vmem:[%s3 + $0x6c] sm:$0xf]
    %v247 = vld [vmem:[%s3 + $0x70] sm:$0xf]
    %v248 = vld [vmem:[%s3 + $0x74] sm:$0xf]
    %v249 = vld [vmem:[%s3 + $0x78] sm:$0xf]
    %v250 = vld [vmem:[%s3 + $0x7c] sm:$0xf]
    %v251 = vpack.c.bf16 %v217, %v217
    %v252 = vpack.c.bf16 %v218, %v218
    %v253 = vunpack.c.l.bf16 %v251
    %v254 = vunpack.c.l.bf16 %v252
    %v255 = vsub.f32 %v217, %v253
    %v256 = vsub.f32 %v218, %v254
    %v257 = vpack.c.bf16 %v255, %v255
    %v258 = vpack.c.bf16 %v256, %v256
    %v291 = vunpack.c.l.b16 %v219
    %v292 = vunpack.c.l.b16 %v220
    %v293 = vunpack.c.l.b16 %v221
    %v294 = vunpack.c.l.b16 %v222
    %v295 = vunpack.c.l.b16 %v223
    %v296 = vunpack.c.l.b16 %v224
    %v297 = vunpack.c.l.b16 %v225
    %v298 = vunpack.c.l.b16 %v226
    %v299 = vunpack.c.l.b16 %v227
    %v300 = vunpack.c.l.b16 %v228
    %v301 = vunpack.c.l.b16 %v229
    %v302 = vunpack.c.l.b16 %v230
    %v303 = vunpack.c.l.b16 %v231
    %v304 = vunpack.c.l.b16 %v232
    %v305 = vunpack.c.l.b16 %v233
    %v306 = vunpack.c.l.b16 %v234
    %v307 = vunpack.c.l.b16 %v235
    %v308 = vunpack.c.l.b16 %v236
    %v309 = vunpack.c.l.b16 %v237
    %v310 = vunpack.c.l.b16 %v238
    %v311 = vunpack.c.l.b16 %v239
    %v312 = vunpack.c.l.b16 %v240
    %v313 = vunpack.c.l.b16 %v241
    %v314 = vunpack.c.l.b16 %v242
    %v315 = vunpack.c.l.b16 %v243
    %v316 = vunpack.c.l.b16 %v244
    %v317 = vunpack.c.l.b16 %v245
    %v318 = vunpack.c.l.b16 %v246
    %v319 = vunpack.c.l.b16 %v247
    %v320 = vunpack.c.l.b16 %v248
    %v321 = vunpack.c.l.b16 %v249
    %v322 = vunpack.c.l.b16 %v250
    %v323 = vpack.c.b16 %v292, %v291
    %v324 = vpack.c.b16 %v294, %v293
    %v325 = vpack.c.b16 %v296, %v295
    %v326 = vpack.c.b16 %v298, %v297
    %v327 = vpack.c.b16 %v300, %v299
    %v328 = vpack.c.b16 %v302, %v301
    %v329 = vpack.c.b16 %v304, %v303
    %v330 = vpack.c.b16 %v306, %v305
    %v331 = vpack.c.b16 %v308, %v307
    %v332 = vpack.c.b16 %v310, %v309
    %v333 = vpack.c.b16 %v312, %v311
    %v334 = vpack.c.b16 %v314, %v313
    %v335 = vpack.c.b16 %v316, %v315
    %v336 = vpack.c.b16 %v318, %v317
    %v337 = vpack.c.b16 %v320, %v319
    %v338 = vpack.c.b16 %v322, %v321
    %355 = vmatprep.subr.bf16.mxu0 0
    %356 = vmatpush1.bf16.msra.mxu0 %v323
    %357 = vmatprep.subr.bf16.mxu0 0
    %358 = vmatpush1.bf16.msra.mxu0 %v324
    %359 = vmatprep.subr.bf16.mxu0 0
    %360 = vmatpush1.bf16.msra.mxu0 %v325
    %361 = vmatprep.subr.bf16.mxu0 0
    %362 = vmatpush1.bf16.msra.mxu0 %v326
    %363 = vmatprep.subr.bf16.mxu0 0
    %364 = vmatpush1.bf16.msra.mxu0 %v327
    %365 = vmatprep.subr.bf16.mxu0 0
    %366 = vmatpush1.bf16.msra.mxu0 %v328
    %367 = vmatprep.subr.bf16.mxu0 0
    %368 = vmatpush1.bf16.msra.mxu0 %v329
    %369 = vmatprep.subr.bf16.mxu0 0
    %370 = vmatpush1.bf16.msra.mxu0 %v330
    %371 = vmatprep.subr.bf16.mxu0 0
    %372 = vmatpush1.bf16.msra.mxu0 %v331
    %373 = vmatprep.subr.bf16.mxu0 0
    %374 = vmatpush1.bf16.msra.mxu0 %v332
    %375 = vmatprep.subr.bf16.mxu0 0
    %376 = vmatpush1.bf16.msra.mxu0 %v333
    %377 = vmatprep.subr.bf16.mxu0 0
    %378 = vmatpush1.bf16.msra.mxu0 %v334
    %379 = vmatprep.subr.bf16.mxu0 0
    %380 = vmatpush1.bf16.msra.mxu0 %v335
    %381 = vmatprep.subr.bf16.mxu0 0
    %382 = vmatpush1.bf16.msra.mxu0 %v336
    %383 = vmatprep.subr.bf16.mxu0 0
    %384 = vmatpush1.bf16.msra.mxu0 %v337
    %385 = vmatprep.subr.bf16.mxu0 0
    %386 = vmatpush1.bf16.msra.mxu0 %v338
    %387 = vmatprep.mubr.bf16.mxu0 %v258
    %388 = vmatmul.mubr.bf16.gmra.mrb[0].mxu0 %v257
    %v389 = vpop.f32.mrb[0].mxu0
    %v390 = vadd.f32 0.0, %v389
    %v391 = vpop.f32.mrb[0].mxu0
    %v392 = vpop.f32.mrb[0].mxu0
    %v393 = vpop.f32.mrb[0].mxu0
    %394 = vdwg.mxu0
    %395 = vmatprep.subr.bf16.mxu0 0
    %396 = vmatpush1.bf16.msra.mxu0 %v323
    %397 = vmatprep.subr.bf16.mxu0 0
    %398 = vmatpush1.bf16.msra.mxu0 %v324
    %399 = vmatprep.subr.bf16.mxu0 0
    %400 = vmatpush1.bf16.msra.mxu0 %v325
    %401 = vmatprep.subr.bf16.mxu0 0
    %402 = vmatpush1.bf16.msra.mxu0 %v326
    %403 = vmatprep.subr.bf16.mxu0 0
    %404 = vmatpush1.bf16.msra.mxu0 %v327
    %405 = vmatprep.subr.bf16.mxu0 0
    %406 = vmatpush1.bf16.msra.mxu0 %v328
    %407 = vmatprep.subr.bf16.mxu0 0
    %408 = vmatpush1.bf16.msra.mxu0 %v329
    %409 = vmatprep.subr.bf16.mxu0 0
    %410 = vmatpush1.bf16.msra.mxu0 %v330
    %411 = vmatprep.subr.bf16.mxu0 0
    %412 = vmatpush1.bf16.msra.mxu0 %v331
    %413 = vmatprep.subr.bf16.mxu0 0
    %414 = vmatpush1.bf16.msra.mxu0 %v332
    %415 = vmatprep.subr.bf16.mxu0 0
    %416 = vmatpush1.bf16.msra.mxu0 %v333
    %417 = vmatprep.subr.bf16.mxu0 0
    %418 = vmatpush1.bf16.msra.mxu0 %v334
    %419 = vmatprep.subr.bf16.mxu0 0
    %420 = vmatpush1.bf16.msra.mxu0 %v335
    %421 = vmatprep.subr.bf16.mxu0 0
    %422 = vmatpush1.bf16.msra.mxu0 %v336
    %423 = vmatprep.subr.bf16.mxu0 0
    %424 = vmatpush1.bf16.msra.mxu0 %v337
    %425 = vmatprep.subr.bf16.mxu0 0
    %426 = vmatpush1.bf16.msra.mxu0 %v338
    %427 = vmatprep.mubr.bf16.mxu0 %v252
    %428 = vmatmul.mubr.bf16.gmra.mrb[0].mxu0 %v251
    %v429 = vpop.f32.mrb[0].mxu0
    %v430 = vadd.f32 %v390, %v429
    %v431 = vpop.f32.mrb[0].mxu0
    %v432 = vpop.f32.mrb[0].mxu0
    %v433 = vpop.f32.mrb[0].mxu0
    %434 = vdwg.mxu0
    %vm435 = vcmask 64512
    %v436 = vsel %vm435, %v430, -inf
    %437 = vmax.xlane.f32.xlu0 %v436
    %v438 = vpop.xlane.xlu0 %437
    %v439 = vsub.f32 %v430, %v438
    %v440 = vmul.f32 %v439, 1.442695
    %v441 = vpow.pop %v440
    %v442 = vsel %vm435, %v441, 0.0
    %443 = vadd.xlane.f32.xlu0 %v442
    %v444 = vpop.xlane.xlu0 %443
    %v445 = vrcp.pop %v444
    %v446 = vmul.f32 %v441, %v445
    %v447 = vld [vmem:[%s4] sm:$0xff]
    %v448 = vpack.c.bf16 %v446, %v446
    %v449 = vunpack.c.l.bf16 %v448
    %v450 = vsub.f32 %v446, %v449
    %v451 = vpack.c.bf16 %v450, %v450
    %v453 = vunpack.c.l.b16 %v447
    %v454 = vunpack.c.h.b16 %v447
    %v455 = vpack.c.b16 %v453, %v453
    %v456 = vpack.c.b16 %v454, %v454
    %v458 = vsel %vm435, %v451, 0
    %vm460 = vcmask 1043456
    %v462 = vsel %vm460, %v455, 0
    %v465 = vsel %vm460, %v456, 0
    %467 = vmatprep.subr.bf16.mxu0 %v465
    %468 = vmatpush1.bf16.msra.mxu0 %v462
    %469 = vmatprep.subr.bf16.mxu0 0
    %470 = vmatpush1.bf16.msra.mxu0 0
    %471 = vmatprep.subr.bf16.mxu0 0
    %472 = vmatpush1.bf16.msra.mxu0 0
    %473 = vmatprep.subr.bf16.mxu0 0
    %474 = vmatpush1.bf16.msra.mxu0 0
    %475 = vmatprep.subr.bf16.mxu0 0
    %476 = vmatpush1.bf16.msra.mxu0 0
    %477 = vmatprep.subr.bf16.mxu0 0
    %478 = vmatpush1.bf16.msra.mxu0 0
    %479 = vmatprep.subr.bf16.mxu0 0
    %480 = vmatpush1.bf16.msra.mxu0 0
    %481 = vmatprep.subr.bf16.mxu0 0
    %482 = vmatpush1.bf16.msra.mxu0 0
    %483 = vmatprep.subr.bf16.mxu0 0
    %484 = vmatpush1.bf16.msra.mxu0 0
    %485 = vmatprep.subr.bf16.mxu0 0
    %486 = vmatpush1.bf16.msra.mxu0 0
    %487 = vmatprep.subr.bf16.mxu0 0
    %488 = vmatpush1.bf16.msra.mxu0 0
    %489 = vmatprep.subr.bf16.mxu0 0
    %490 = vmatpush1.bf16.msra.mxu0 0
    %491 = vmatprep.subr.bf16.mxu0 0
    %492 = vmatpush1.bf16.msra.mxu0 0
    %493 = vmatprep.subr.bf16.mxu0 0
    %494 = vmatpush1.bf16.msra.mxu0 0
    %495 = vmatprep.subr.bf16.mxu0 0
    %496 = vmatpush1.bf16.msra.mxu0 0
    %497 = vmatprep.subr.bf16.mxu0 0
    %498 = vmatpush1.bf16.msra.mxu0 0
    %499 = vmatprep.mubr.bf16.mxu0 0
    %500 = vmatmul.mubr.bf16.gmra.mrb[0].mxu0 %v458
    %v501 = vpop.f32.mrb[0].mxu0
    %v502 = vadd.f32 0.0, %v501
    %v503 = vpop.f32.mrb[0].mxu0
    %v504 = vadd.f32 0.0, %v503
    %v505 = vpop.f32.mrb[0].mxu0
    %v506 = vpop.f32.mrb[0].mxu0
    %507 = vdwg.mxu0
    %v509 = vsel %vm435, %v448, 0
    %511 = vmatprep.subr.bf16.mxu0 %v465
    %512 = vmatpush1.bf16.msra.mxu0 %v462
    %513 = vmatprep.subr.bf16.mxu0 0
    %514 = vmatpush1.bf16.msra.mxu0 0
    %515 = vmatprep.subr.bf16.mxu0 0
    %516 = vmatpush1.bf16.msra.mxu0 0
    %517 = vmatprep.subr.bf16.mxu0 0
    %518 = vmatpush1.bf16.msra.mxu0 0
    %519 = vmatprep.subr.bf16.mxu0 0
    %520 = vmatpush1.bf16.msra.mxu0 0
    %521 = vmatprep.subr.bf16.mxu0 0
    %522 = vmatpush1.bf16.msra.mxu0 0
    %523 = vmatprep.subr.bf16.mxu0 0
    %524 = vmatpush1.bf16.msra.mxu0 0
    %525 = vmatprep.subr.bf16.mxu0 0
    %526 = vmatpush1.bf16.msra.mxu0 0
    %527 = vmatprep.subr.bf16.mxu0 0
    %528 = vmatpush1.bf16.msra.mxu0 0
    %529 = vmatprep.subr.bf16.mxu0 0
    %530 = vmatpush1.bf16.msra.mxu0 0
    %531 = vmatprep.subr.bf16.mxu0 0
    %532 = vmatpush1.bf16.msra.mxu0 0
    %533 = vmatprep.subr.bf16.mxu0 0
    %534 = vmatpush1.bf16.msra.mxu0 0
    %535 = vmatprep.subr.bf16.mxu0 0
    %536 = vmatpush1.bf16.msra.mxu0 0
    %537 = vmatprep.subr.bf16.mxu0 0
    %538 = vmatpush1.bf16.msra.mxu0 0
    %539 = vmatprep.subr.bf16.mxu0 0
    %540 = vmatpush1.bf16.msra.mxu0 0
    %541 = vmatprep.subr.bf16.mxu0 0
    %542 = vmatpush1.bf16.msra.mxu0 0
    %543 = vmatprep.mubr.bf16.mxu0 0
    %544 = vmatmul.mubr.bf16.gmra.mrb[0].mxu0 %v509
    %v545 = vpop.f32.mrb[0].mxu0
    %v546 = vadd.f32 %v502, %v545
    %v547 = vpop.f32.mrb[0].mxu0
    %v548 = vadd.f32 %v504, %v547
    %v549 = vpop.f32.mrb[0].mxu0
    %v550 = vpop.f32.mrb[0].mxu0
    %551 = vdwg.mxu0
    %v552 = vmul.f32 %v546, %v216
    %v553 = vmul.f32 %v548, %v25
    %v554 = vld [vmem:[%s5] sm:$0xf]
    %v555 = vld [vmem:[%s5 + $0x4] sm:$0xf]
    %v556 = vld [vmem:[%s5 + $0x8] sm:$0xf]
    %v557 = vld [vmem:[%s5 + $0xc] sm:$0xf]
    %v558 = vld [vmem:[%s5 + $0x10] sm:$0xf]
    %v559 = vld [vmem:[%s5 + $0x14] sm:$0xf]
    %v560 = vld [vmem:[%s5 + $0x18] sm:$0xf]
    %v561 = vld [vmem:[%s5 + $0x1c] sm:$0xf]
    %v562 = vld [vmem:[%s5 + $0x20] sm:$0xf]
    %v563 = vld [vmem:[%s5 + $0x24] sm:$0xf]
    %v564 = vld [vmem:[%s5 + $0x28] sm:$0xf]
    %v565 = vld [vmem:[%s5 + $0x2c] sm:$0xf]
    %v566 = vld [vmem:[%s5 + $0x30] sm:$0xf]
    %v567 = vld [vmem:[%s5 + $0x34] sm:$0xf]
    %v568 = vld [vmem:[%s5 + $0x38] sm:$0xf]
    %v569 = vld [vmem:[%s5 + $0x3c] sm:$0xf]
    %v570 = vld [vmem:[%s5 + $0x40] sm:$0xf]
    %v571 = vld [vmem:[%s5 + $0x44] sm:$0xf]
    %v572 = vld [vmem:[%s5 + $0x48] sm:$0xf]
    %v573 = vld [vmem:[%s5 + $0x4c] sm:$0xf]
    %v574 = vld [vmem:[%s5 + $0x50] sm:$0xf]
    %v575 = vld [vmem:[%s5 + $0x54] sm:$0xf]
    %v576 = vld [vmem:[%s5 + $0x58] sm:$0xf]
    %v577 = vld [vmem:[%s5 + $0x5c] sm:$0xf]
    %v578 = vld [vmem:[%s5 + $0x60] sm:$0xf]
    %v579 = vld [vmem:[%s5 + $0x64] sm:$0xf]
    %v580 = vld [vmem:[%s5 + $0x68] sm:$0xf]
    %v581 = vld [vmem:[%s5 + $0x6c] sm:$0xf]
    %v582 = vld [vmem:[%s5 + $0x70] sm:$0xf]
    %v583 = vld [vmem:[%s5 + $0x74] sm:$0xf]
    %v584 = vld [vmem:[%s5 + $0x78] sm:$0xf]
    %v585 = vld [vmem:[%s5 + $0x7c] sm:$0xf]
    %v586 = vpack.c.bf16 %v552, %v552
    %v587 = vpack.c.bf16 %v553, %v553
    %v588 = vunpack.c.l.bf16 %v586
    %v589 = vunpack.c.l.bf16 %v587
    %v590 = vsub.f32 %v552, %v588
    %v591 = vsub.f32 %v553, %v589
    %v592 = vpack.c.bf16 %v590, %v590
    %v593 = vpack.c.bf16 %v591, %v591
    %v626 = vunpack.c.l.b16 %v554
    %v627 = vunpack.c.l.b16 %v555
    %v628 = vunpack.c.l.b16 %v556
    %v629 = vunpack.c.l.b16 %v557
    %v630 = vunpack.c.l.b16 %v558
    %v631 = vunpack.c.l.b16 %v559
    %v632 = vunpack.c.l.b16 %v560
    %v633 = vunpack.c.l.b16 %v561
    %v634 = vunpack.c.l.b16 %v562
    %v635 = vunpack.c.l.b16 %v563
    %v636 = vunpack.c.l.b16 %v564
    %v637 = vunpack.c.l.b16 %v565
    %v638 = vunpack.c.l.b16 %v566
    %v639 = vunpack.c.l.b16 %v567
    %v640 = vunpack.c.l.b16 %v568
    %v641 = vunpack.c.l.b16 %v569
    %v642 = vunpack.c.l.b16 %v570
    %v643 = vunpack.c.l.b16 %v571
    %v644 = vunpack.c.l.b16 %v572
    %v645 = vunpack.c.l.b16 %v573
    %v646 = vunpack.c.l.b16 %v574
    %v647 = vunpack.c.l.b16 %v575
    %v648 = vunpack.c.l.b16 %v576
    %v649 = vunpack.c.l.b16 %v577
    %v650 = vunpack.c.l.b16 %v578
    %v651 = vunpack.c.l.b16 %v579
    %v652 = vunpack.c.l.b16 %v580
    %v653 = vunpack.c.l.b16 %v581
    %v654 = vunpack.c.l.b16 %v582
    %v655 = vunpack.c.l.b16 %v583
    %v656 = vunpack.c.l.b16 %v584
    %v657 = vunpack.c.l.b16 %v585
    %v658 = vpack.c.b16 %v627, %v626
    %v659 = vpack.c.b16 %v629, %v628
    %v660 = vpack.c.b16 %v631, %v630
    %v661 = vpack.c.b16 %v633, %v632
    %v662 = vpack.c.b16 %v635, %v634
    %v663 = vpack.c.b16 %v637, %v636
    %v664 = vpack.c.b16 %v639, %v638
    %v665 = vpack.c.b16 %v641, %v640
    %v666 = vpack.c.b16 %v643, %v642
    %v667 = vpack.c.b16 %v645, %v644
    %v668 = vpack.c.b16 %v647, %v646
    %v669 = vpack.c.b16 %v649, %v648
    %v670 = vpack.c.b16 %v651, %v650
    %v671 = vpack.c.b16 %v653, %v652
    %v672 = vpack.c.b16 %v655, %v654
    %v673 = vpack.c.b16 %v657, %v656
    %690 = vmatprep.subr.bf16.mxu0 0
    %691 = vmatpush1.bf16.msra.mxu0 %v658
    %692 = vmatprep.subr.bf16.mxu0 0
    %693 = vmatpush1.bf16.msra.mxu0 %v659
    %694 = vmatprep.subr.bf16.mxu0 0
    %695 = vmatpush1.bf16.msra.mxu0 %v660
    %696 = vmatprep.subr.bf16.mxu0 0
    %697 = vmatpush1.bf16.msra.mxu0 %v661
    %698 = vmatprep.subr.bf16.mxu0 0
    %699 = vmatpush1.bf16.msra.mxu0 %v662
    %700 = vmatprep.subr.bf16.mxu0 0
    %701 = vmatpush1.bf16.msra.mxu0 %v663
    %702 = vmatprep.subr.bf16.mxu0 0
    %703 = vmatpush1.bf16.msra.mxu0 %v664
    %704 = vmatprep.subr.bf16.mxu0 0
    %705 = vmatpush1.bf16.msra.mxu0 %v665
    %706 = vmatprep.subr.bf16.mxu0 0
    %707 = vmatpush1.bf16.msra.mxu0 %v666
    %708 = vmatprep.subr.bf16.mxu0 0
    %709 = vmatpush1.bf16.msra.mxu0 %v667
    %710 = vmatprep.subr.bf16.mxu0 0
    %711 = vmatpush1.bf16.msra.mxu0 %v668
    %712 = vmatprep.subr.bf16.mxu0 0
    %713 = vmatpush1.bf16.msra.mxu0 %v669
    %714 = vmatprep.subr.bf16.mxu0 0
    %715 = vmatpush1.bf16.msra.mxu0 %v670
    %716 = vmatprep.subr.bf16.mxu0 0
    %717 = vmatpush1.bf16.msra.mxu0 %v671
    %718 = vmatprep.subr.bf16.mxu0 0
    %719 = vmatpush1.bf16.msra.mxu0 %v672
    %720 = vmatprep.subr.bf16.mxu0 0
    %721 = vmatpush1.bf16.msra.mxu0 %v673
    %722 = vmatprep.mubr.bf16.mxu0 %v593
    %723 = vmatmul.mubr.bf16.gmra.mrb[0].mxu0 %v592
    %v724 = vpop.f32.mrb[0].mxu0
    %v725 = vadd.f32 0.0, %v724
    %v726 = vpop.f32.mrb[0].mxu0
    %v727 = vpop.f32.mrb[0].mxu0
    %v728 = vpop.f32.mrb[0].mxu0
    %729 = vdwg.mxu0
    %730 = vmatprep.subr.bf16.mxu0 0
    %731 = vmatpush1.bf16.msra.mxu0 %v658
    %732 = vmatprep.subr.bf16.mxu0 0
    %733 = vmatpush1.bf16.msra.mxu0 %v659
    %734 = vmatprep.subr.bf16.mxu0 0
    %735 = vmatpush1.bf16.msra.mxu0 %v660
    %736 = vmatprep.subr.bf16.mxu0 0
    %737 = vmatpush1.bf16.msra.mxu0 %v661
    %738 = vmatprep.subr.bf16.mxu0 0
    %739 = vmatpush1.bf16.msra.mxu0 %v662
    %740 = vmatprep.subr.bf16.mxu0 0
    %741 = vmatpush1.bf16.msra.mxu0 %v663
    %742 = vmatprep.subr.bf16.mxu0 0
    %743 = vmatpush1.bf16.msra.mxu0 %v664
    %744 = vmatprep.subr.bf16.mxu0 0
    %745 = vmatpush1.bf16.msra.mxu0 %v665
    %746 = vmatprep.subr.bf16.mxu0 0
    %747 = vmatpush1.bf16.msra.mxu0 %v666
    %748 = vmatprep.subr.bf16.mxu0 0
    %749 = vmatpush1.bf16.msra.mxu0 %v667
    %750 = vmatprep.subr.bf16.mxu0 0
    %751 = vmatpush1.bf16.msra.mxu0 %v668
    %752 = vmatprep.subr.bf16.mxu0 0
    %753 = vmatpush1.bf16.msra.mxu0 %v669
    %754 = vmatprep.subr.bf16.mxu0 0
    %755 = vmatpush1.bf16.msra.mxu0 %v670
    %756 = vmatprep.subr.bf16.mxu0 0
    %757 = vmatpush1.bf16.msra.mxu0 %v671
    %758 = vmatprep.subr.bf16.mxu0 0
    %759 = vmatpush1.bf16.msra.mxu0 %v672
    %760 = vmatprep.subr.bf16.mxu0 0
    %761 = vmatpush1.bf16.msra.mxu0 %v673
    %762 = vmatprep.mubr.bf16.mxu0 %v587
    %763 = vmatmul.mubr.bf16.gmra.mrb[0].mxu0 %v586
    %v764 = vpop.f32.mrb[0].mxu0
    %v765 = vadd.f32 %v725, %v764
    %v766 = vpop.f32.mrb[0].mxu0
    %v767 = vpop.f32.mrb[0].mxu0
    %v768 = vpop.f32.mrb[0].mxu0
    %769 = vdwg.mxu0
    %770 = vst.msk [vmem:[#allocation2] sm:$0xff] %vm58, %v765
    // Predicated region
    $region26: #{tpu_custom_call.1} parent=1 // pred_check
      _
    $region27: #{tpu_custom_call.1} parent=1 // pred_check_branch
      %772 = sbr.rel (0) target = $region29
    $region28: #{tpu_custom_call.1} parent=1 // pred_region
      %s774 = ssub.s32 128, 128
      %775 = vsyncadd [#allocation3], %s774
      %s777 = sshll.u32 [#allocation2], 4
      %s778 = int_to_ptr.vmem [resolvable:$true] %s777
      %780 = dma.vmem_to_hbm [thread:$0]  %s778, 128, %s6, [#allocation3]
    $region29: #{tpu_custom_call.1} parent=1 // pred_fallthru
      _
    // Predicated region
    $region30: #{tpu_custom_call.1} parent=1 // pred_check
      _
    $region31: #{tpu_custom_call.1} parent=1 // pred_check_branch
      %782 = sbr.rel (0) target = $region33
    $region32: #{tpu_custom_call.1} parent=1 // pred_region
      %783 = dma.done [#allocation3], 128
    $region33: #{tpu_custom_call.1} parent=1 // pred_fallthru
      _
    %784 = vsyncpa [#allocation3], 1

</llo_original>
